<compile_context>
chip_gen: v5e
topology: v5e:2x2
jax: 0.10.0
libtpu: 0.0.40
codegen_flags: <defaults>
</compile_context>

<pallas_src>
import jax
import jax.numpy as jnp
from jax.experimental import pallas as pl
from jax.experimental.pallas import tpu as pltpu

LANE = 128
BLOCK_ROWS = 1024  # (1024, 128) f32 = 512 KiB per input tile


def _reparam_kernel(x_ref, eps_ref, o_ref):
    # mu = logvar = enc(x) = x ; z = mu + eps * exp(0.5 * logvar) ; dec = Identity
    x = x_ref[...]
    o_ref[...] = x + eps_ref[...] * jnp.exp(0.5 * x)


def _reparam_slab(x_slab, eps_slab, block_rows):
    rows = x_slab.shape[0]
    br = min(block_rows, rows)
    # (8,128) constraint: block rows must be a multiple of 8 unless equal to the
    # full extent of that dimension.
    if br != rows and br % 8 != 0:
        br = max(8, (br // 8) * 8)
    grid = (pl.cdiv(rows, br),)
    blk = pl.BlockSpec((br, LANE), lambda i: (i, 0))
    return pl.pallas_call(
        _reparam_kernel,
        out_shape=jax.ShapeDtypeStruct(x_slab.shape, x_slab.dtype),
        grid_spec=pltpu.PrefetchScalarGridSpec(
            num_scalar_prefetch=0,
            grid=grid,
            in_specs=[blk, blk],
            out_specs=blk,
        ),
        compiler_params=pltpu.CompilerParams(
            dimension_semantics=("parallel",),
            vmem_limit_bytes=32 << 20,
        ),
    )(x_slab, eps_slab)


def ae_forward(x, eps=None, prob_enc=True, block_rows=BLOCK_ROWS):
    """Pallas implementation of AE_abstract.forward.

    x   : NCHW float32 array
    eps : same shape as x, standard-normal noise (only used when prob_enc=True)
    """
    if not prob_enc:
        # enc and dec are nn.Identity -> forward(x) == x. No HBM traffic needed.
        return x

    assert eps is not None
    orig_shape = x.shape
    n = x.size

    if n % LANE == 0:
        # Common case: free row-major reshape into a lane-dense slab, no padding.
        rows = n // LANE
        out = _reparam_slab(x.reshape(rows, LANE), eps.reshape(rows, LANE), block_rows)
        return out.reshape(orig_shape)

    # Rare tail case: flat size not a multiple of 128 -> pad only the sub-128
    # remainder, run, then slice it back off.
    pad = (-n) % LANE
    x_flat = jnp.pad(x.reshape(-1), (0, pad))
    eps_flat = jnp.pad(eps.reshape(-1), (0, pad))
    out = _reparam_slab(x_flat.reshape(-1, LANE), eps_flat.reshape(-1, LANE), block_rows)
    return out.reshape(-1)[:n].reshape(orig_shape)


if __name__ == "__main__":
    key = jax.random.PRNGKey(0)
    kx, keps, kx2, keps2 = jax.random.split(key, 4)

    # Small NCHW input consistent with the module's image-autoencoder usage.
    N, C, H, W = 2, 4, 16, 16
    x = jax.random.normal(kx, (N, C, H, W), dtype=jnp.float32)
    eps = jax.random.normal(keps, (N, C, H, W), dtype=jnp.float32)

    # prob_enc = True path: forward(x) = x + eps * exp(0.5 * x)
    out_prob = ae_forward(x, eps, prob_enc=True)
    out_prob = jax.block_until_ready(out_prob)
    ref_prob = x + eps * jnp.exp(0.5 * x)
    assert out_prob.shape == x.shape and out_prob.dtype == x.dtype
    assert jnp.allclose(out_prob, ref_prob, atol=1e-5, rtol=1e-5)

    # prob_enc = False path: forward(x) = x (identity through enc/dec)
    out_det = ae_forward(x, prob_enc=False)
    out_det = jax.block_until_ready(out_det)
    assert jnp.allclose(out_det, x)

    # Tail-path sanity check: flat size not a multiple of 128.
    x2 = jax.random.normal(kx2, (2, 3, 7, 5), dtype=jnp.float32)
    eps2 = jax.random.normal(keps2, (2, 3, 7, 5), dtype=jnp.float32)
    out2 = jax.block_until_ready(ae_forward(x2, eps2, prob_enc=True))
    ref2 = x2 + eps2 * jnp.exp(0.5 * x2)
    assert jnp.allclose(out2, ref2, atol=1e-5, rtol=1e-5)

    print("KERNEL_OK")
</pallas_src>

<mosaic_0001>
module attributes {stable_mosaic.version = 11 : i64} {
  func.func @_reparam_kernel(%arg0: i32, %arg1: memref<16x128xf32, #tpu.memory_space<vmem>>, %arg2: memref<16x128xf32, #tpu.memory_space<vmem>>, %arg3: memref<16x128xf32, #tpu.memory_space<vmem>>) attributes {dimension_semantics = [#tpu.dimension_semantics<parallel>], iteration_bounds = array<i64: 1>, scalar_prefetch = 0 : i64, scratch_operands = 0 : i64, tpu.core_type = #tpu.core_type<tc>, window_params = [{transform_indices = @transform_0, window_bounds = array<i64: 16, 128>}, {transform_indices = @transform_1, window_bounds = array<i64: 16, 128>}, {transform_indices = @transform_2, window_bounds = array<i64: 16, 128>}]} {
    %c0 = arith.constant 0 : index
    %c0_0 = arith.constant 0 : index
    %0 = vector.load %arg1[%c0, %c0_0] : memref<16x128xf32, #tpu.memory_space<vmem>>, vector<16x128xf32>
    %c0_1 = arith.constant 0 : index
    %c0_2 = arith.constant 0 : index
    %1 = vector.load %arg2[%c0_1, %c0_2] : memref<16x128xf32, #tpu.memory_space<vmem>>, vector<16x128xf32>
    %cst = arith.constant 5.000000e-01 : f32
    %2 = vector.broadcast %cst : f32 to vector<16x128xf32>
    %3 = arith.mulf %2, %0 : vector<16x128xf32>
    %4 = math.exp %3 : vector<16x128xf32>
    %5 = arith.mulf %1, %4 : vector<16x128xf32>
    %6 = arith.addf %0, %5 : vector<16x128xf32>
    %c0_3 = arith.constant 0 : index
    %c0_4 = arith.constant 0 : index
    %7 = vector.load %arg3[%c0_3, %c0_4] : memref<16x128xf32, #tpu.memory_space<vmem>>, vector<16x128xf32>
    tpu.vector_store %arg3[%c0_3, %c0_4], %6 {strides = array<i32>} : memref<16x128xf32, #tpu.memory_space<vmem>>, vector<16x128xf32>,
    return
  }
  func.func @transform_0(%arg0: i32) -> (i32, i32) {
    %c0_i32 = arith.constant 0 : i32
    %c0_i32_0 = arith.constant 0 : i32
    return %arg0, %c0_i32 : i32, i32
  }
  func.func @transform_1(%arg0: i32) -> (i32, i32) {
    %c0_i32 = arith.constant 0 : i32
    %c0_i32_0 = arith.constant 0 : i32
    return %arg0, %c0_i32 : i32, i32
  }
  func.func @transform_2(%arg0: i32) -> (i32, i32) {
    %c0_i32 = arith.constant 0 : i32
    %c0_i32_0 = arith.constant 0 : i32
    return %arg0, %c0_i32 : i32, i32
  }
}

</mosaic_0001>

<llo_original>
// kernel: tpu_custom_call.1
$region0: #{tpu_custom_call.1}
  #allocation0 [shape = 'u32[]', space=smem, size = 0x4, offset = 0x4, fixed_abs, tag = 'smem constant byte address 0x4 - core index']
  #allocation1 [shape = 'u32[72,128]{1,0:T(1,128)}', space=vmem, size = 0x9000, scoped, tag = 'internal scratch']
  %s0 = inlined_call_operand.hbm [shape: f32[16,128], index: 0, kind: input, shape index: {}]
  %s1 = inlined_call_operand.hbm [shape: f32[16,128], index: 1, kind: input, shape index: {}]
  %s2 = inlined_call_operand.hbm [shape: f32[16,128], index: 2, kind: output, shape index: {}]
  %s3 = sld [smem:[#allocation0]]
  $region26: #{tpu_custom_call.1} parent=0
    _
  %s5 = ssub.s32 1, %s3
  %s6 = scalar_select 0, %s5, %s3
  $region1: #{tpu_custom_call.1} parent=0
    #allocation2 [shape = 'u8[8192]{0}', space=vmem, size = 0x2000, scoped, tag = 'input window, operand 0, single buffered']
    #allocation3 [shape = 's32[1]{0}', space=sflag, size = 0x4, scoped, tag = 'scoped memory for tpu_custom_call.1']
    #allocation4 [shape = 's32[1]{0}', space=sflag, size = 0x4, scoped, tag = 'scoped memory for tpu_custom_call.1']
    #allocation5 [shape = 'u8[8192]{0}', space=vmem, size = 0x2000, scoped, tag = 'input window, operand 1, single buffered']
    #allocation6 [shape = 's32[1]{0}', space=sflag, size = 0x4, scoped, tag = 'scoped memory for tpu_custom_call.1']
    #allocation7 [shape = 'u8[8192]{0}', space=vmem, size = 0x2000, scoped, tag = 'output window, operand 0, single buffered']
    %7 = vsyncpa [#allocation3], 0
    %8 = vsyncpa [#allocation6], 0
    %9 = vsyncpa [#allocation4], 0
    // Predicated region
    $region2: #{tpu_custom_call.1} parent=1 // pred_check
      _
    $region3: #{tpu_custom_call.1} parent=1 // pred_check_branch
      %11 = sbr.rel (0) target = $region5
    $region4: #{tpu_custom_call.1} parent=1 // pred_region
      %13 = vsyncadd [#allocation3], 0
      %s14 = sshll.u32 %s0, 4
      %s15 = int_to_ptr.hbm [resolvable:$true] %s14
      %s16 = sshll.u32 [#allocation2], 4
      %s17 = int_to_ptr.vmem [resolvable:$true] %s16
      %22 = dma.hbm_to_vmem [thread:$0]  %s15, 256, %s17, [#allocation3], 128, 128, 8
    $region5: #{tpu_custom_call.1} parent=1 // pred_fallthru
      _
    // Predicated region
    $region6: #{tpu_custom_call.1} parent=1 // pred_check
      _
    $region7: #{tpu_custom_call.1} parent=1 // pred_check_branch
      %24 = sbr.rel (0) target = $region9
    $region8: #{tpu_custom_call.1} parent=1 // pred_region
      %26 = vsyncadd [#allocation6], 0
      %s27 = sshll.u32 %s1, 4
      %s28 = int_to_ptr.hbm [resolvable:$true] %s27
      %s29 = sshll.u32 [#allocation5], 4
      %s30 = int_to_ptr.vmem [resolvable:$true] %s29
      %35 = dma.hbm_to_vmem [thread:$0]  %s28, 256, %s30, [#allocation6], 128, 128, 8
    $region9: #{tpu_custom_call.1} parent=1 // pred_fallthru
      _
    // Predicated region
    $region10: #{tpu_custom_call.1} parent=1 // pred_check
      _
    $region11: #{tpu_custom_call.1} parent=1 // pred_check_branch
      %37 = sbr.rel (0) target = $region13
    $region12: #{tpu_custom_call.1} parent=1 // pred_region
      %39 = dma.done [#allocation3], 256
    $region13: #{tpu_custom_call.1} parent=1 // pred_fallthru
      _
    // Predicated region
    $region14: #{tpu_custom_call.1} parent=1 // pred_check
      _
    $region15: #{tpu_custom_call.1} parent=1 // pred_check_branch
      %41 = sbr.rel (0) target = $region17
    $region16: #{tpu_custom_call.1} parent=1 // pred_region
      %43 = dma.done [#allocation6], 256
    $region17: #{tpu_custom_call.1} parent=1 // pred_fallthru
      _
    %v44 = vld [vmem:[#allocation2] sm:$0xff]
    %v45 = vld [vmem:[#allocation2 + $0x8] sm:$0xff]
    %v46 = vld [vmem:[#allocation5] sm:$0xff]
    %v47 = vld [vmem:[#allocation5 + $0x8] sm:$0xff]
    %v48 = vmul.f32 %v44, 0.5
    %v49 = vmul.f32 %v45, 0.5
    %v50 = vmul.f32 %v48, 1.442695
    %v51 = vpow.pop %v50
    %v52 = vmul.f32 %v49, 1.442695
    %v53 = vpow.pop %v52
    %v54 = vmul.f32 %v46, %v51
    %v55 = vmul.f32 %v47, %v53
    %v56 = vadd.f32 %v44, %v54
    %v57 = vadd.f32 %v45, %v55
    %58 = vst [vmem:[#allocation7] sm:$0xff] %v56
    %59 = vst [vmem:[#allocation7 + $0x8] sm:$0xff] %v57
    // Predicated region
    $region18: #{tpu_custom_call.1} parent=1 // pred_check
      _
    $region19: #{tpu_custom_call.1} parent=1 // pred_check_branch
      %61 = sbr.rel (0) target = $region21
    $region20: #{tpu_custom_call.1} parent=1 // pred_region
      %63 = vsyncadd [#allocation4], 0
      %s64 = sshll.u32 [#allocation7], 4
      %s65 = int_to_ptr.vmem [resolvable:$true] %s64
      %s66 = sshll.u32 %s2, 4
      %s67 = int_to_ptr.hbm [resolvable:$true] %s66
      %72 = dma.vmem_to_hbm [thread:$0]  %s65, 256, %s67, [#allocation4], 128, 128, 8
    $region21: #{tpu_custom_call.1} parent=1 // pred_fallthru
      _
    // Predicated region
    $region22: #{tpu_custom_call.1} parent=1 // pred_check
      _
    $region23: #{tpu_custom_call.1} parent=1 // pred_check_branch
      %74 = sbr.rel (0) target = $region25
    $region24: #{tpu_custom_call.1} parent=1 // pred_region
      %76 = dma.done [#allocation4], 256
    $region25: #{tpu_custom_call.1} parent=1 // pred_fallthru
      _
    %77 = vsyncpa [#allocation3], 1
    %78 = vsyncpa [#allocation6], 1
    %79 = vsyncpa [#allocation4], 1

</llo_original>
